<compile_context>
chip_gen: v7x
topology: tpu7x:2x2x1
jax: 0.10.0
libtpu: 0.0.40
codegen_flags: <defaults>
</compile_context>

<pallas_src>
import functools
import math

import jax
import jax.numpy as jnp
from jax.experimental import pallas as pl
from jax.experimental.pallas import tpu as pltpu


# Every ANCHOR_STRIDE-th frequency octave is computed with a direct jnp.sin; the
# octaves in between come from the double-angle recurrence (<=2 doublings -> error
# stays at the ~1e-6 level, well inside the 1e-4 test tolerance).
_ANCHOR_STRIDE = 3


def _cdiv(a, b):
    return (a + b - 1) // b


def _round_up(a, b):
    return _cdiv(a, b) * b


def _pick_batch_tile(B, batch_tile):
    """Batch-tile (lane) width: big tiles, but aim for >=4 grid steps when the
    batch allows so both v7x TensorCores stay double-buffered.  On single-core
    chips (v5e/v6e) the extra steps cost only ~0.35us each, which is negligible
    at >=128-wide tiles."""
    cap = max(128, (int(batch_tile) // 128) * 128)
    want = _round_up(_cdiv(B, 4), 128)
    return min(cap, want)


def _pos_enc_kernel(x_ref, out_ref, *, num_freqs, d_in, include_input,
                    d_out, rows_built, transpose_out):
    # x_ref: (d_in, bt)  -- batch on lanes (lane-dense compute)
    # out_ref: (bt, d_out) if transpose_out else (d_out, bt)
    x = x_ref[...]
    half_pi = jnp.float32(0.5 * math.pi)

    # --- anchors: ONE fused sin over the stacked [x*2^a, x*2^a + pi/2] rows ------
    anchors = list(range(0, num_freqs, _ANCHOR_STRIDE))
    pre = []
    for a in anchors:
        xa = x * jnp.float32(2.0 ** a)      # scalar splat multiply (VPU)
        pre.append(xa)                      # phase 0     -> sin(2^a x)
        pre.append(xa + half_pi)            # phase pi/2  -> cos(2^a x)
    base = jnp.sin(jnp.concatenate(pre, axis=0))      # (2*len(anchors)*d_in, bt)

    # --- remaining octaves via the exact double-angle recurrence (cheap VPU ops) -
    blocks = [None] * (2 * num_freqs)
    for ai, a in enumerate(anchors):
        s = base[(2 * ai) * d_in:(2 * ai + 1) * d_in]      # sin(2^a x)
        c = base[(2 * ai + 1) * d_in:(2 * ai + 2) * d_in]  # cos(2^a x)
        blocks[2 * a], blocks[2 * a + 1] = s, c
        for f in range(a + 1, min(a + _ANCHOR_STRIDE, num_freqs)):
            s, c = 2.0 * (s * c), 1.0 - 2.0 * (s * s)
            blocks[2 * f], blocks[2 * f + 1] = s, c

    # --- assemble the full output row block in order [x?, sin f0, cos f0, ...] ---
    pieces = ([x] if include_input else []) + blocks
    n_pad = rows_built - d_out
    if n_pad:
        # Pad the row count to a sublane multiple so the in-kernel transpose stays
        # tile-aligned; the pad rows are sliced off again before the store.
        pieces.append(jnp.zeros((n_pad, x.shape[1]), jnp.float32))
    full = jnp.concatenate(pieces, axis=0)             # (rows_built, bt)

    if transpose_out:
        # In-kernel XLU transpose -> store the module's row-major layout directly:
        # one aligned full-block store, no wrapper-side transpose / extra HBM pass.
        out_ref[...] = jnp.transpose(full, (1, 0))[:, :d_out]
    else:
        # Lane-major (d_out, bt) store: already lane-dense, single full-block vst.
        out_ref[...] = full


@functools.lru_cache(maxsize=None)
def _row_major_store_ok(rows_built, d_out):
    """Feature-probe: does Mosaic lower the in-kernel (rows, lanes)->(lanes, rows)
    f32 transpose used by the row-major store path?  (Tiny AOT compile, cached.)"""
    def kern(x_ref, o_ref):
        o_ref[...] = jnp.transpose(x_ref[...], (1, 0))[:, :d_out]
    try:
        fn = pl.pallas_call(
            kern,
            out_shape=jax.ShapeDtypeStruct((256, d_out), jnp.float32),
            grid=(1,),
            in_specs=[pl.BlockSpec((rows_built, 256), lambda i: (0, 0))],
            out_specs=pl.BlockSpec((256, d_out), lambda i: (0, 0)),
        )
        jax.jit(fn).lower(
            jax.ShapeDtypeStruct((rows_built, 256), jnp.float32)).compile()
        return True
    except Exception:
        return False


def _pos_enc_call(x_lane, num_freqs, d_in, include_input, d_out,
                  rows_built, bt, transpose_out):
    B_pad = x_lane.shape[1]
    n_steps = B_pad // bt
    kernel = functools.partial(
        _pos_enc_kernel, num_freqs=num_freqs, d_in=d_in,
        include_input=include_input, d_out=d_out, rows_built=rows_built,
        transpose_out=transpose_out)

    if transpose_out:
        out_shape = jax.ShapeDtypeStruct((B_pad, d_out), jnp.float32)
        out_spec = pl.BlockSpec((bt, d_out), lambda i: (i, 0))
    else:
        out_shape = jax.ShapeDtypeStruct((d_out, B_pad), jnp.float32)
        out_spec = pl.BlockSpec((d_out, bt), lambda i: (0, i))

    return pl.pallas_call(
        kernel,
        out_shape=out_shape,
        grid=(n_steps,),
        in_specs=[pl.BlockSpec((d_in, bt), lambda i: (0, i))],
        out_specs=out_spec,
        compiler_params=pltpu.CompilerParams(
            dimension_semantics=("parallel",),
            vmem_limit_bytes=40 * 1024 * 1024),
    )(x_lane)


def positional_encoding_lane_major(x_lane, num_freqs=6, include_input=True,
                                   batch_tile=4096):
    """Fusion-friendly form: x_lane (d_in, B) -> (d_out, B), batch on lanes.

    This output needs no layout changes and is the ideal MXU RHS operand for the
    first NeRF MLP matmul; prefer it when the consumer can take (d_out, B).
    B a multiple of 128 avoids the padding/slice copy."""
    d_in, B = x_lane.shape
    d_out = 2 * num_freqs * d_in + (d_in if include_input else 0)
    if B == 0:
        return jnp.zeros((d_out, 0), jnp.float32)
    x_lane = x_lane.astype(jnp.float32)
    bt = _pick_batch_tile(B, batch_tile)
    n_steps = _cdiv(B, bt)
    B_pad = n_steps * bt
    if B_pad != B:
        x_lane = jnp.pad(x_lane, ((0, 0), (0, B_pad - B)))
    out_t = _pos_enc_call(x_lane, num_freqs, d_in, include_input, d_out,
                          rows_built=d_out, bt=bt, transpose_out=False)
    return out_t[:, :B] if B_pad != B else out_t


def positional_encoding(x, num_freqs=6, include_input=True, batch_tile=4096):
    """NeRF positional encoding, drop-in for the torch module: (B, d_in) -> (B, d_out)."""
    B, d_in = x.shape
    d_out = 2 * num_freqs * d_in + (d_in if include_input else 0)
    if B == 0:
        # Mirrors the empty-batch early-exit of the torch module.
        return jnp.zeros((0, d_out), jnp.float32)
    x = x.astype(jnp.float32)

    rows_built = _round_up(d_out, 8)
    if not _row_major_store_ok(rows_built, d_out):
        # Fallback for Mosaic versions without the in-kernel transpose: lane-major
        # kernel + a single XLA transpose at the boundary (layout shim only).
        return positional_encoding_lane_major(
            x.T, num_freqs=num_freqs, include_input=include_input,
            batch_tile=batch_tile).T

    bt = _pick_batch_tile(B, batch_tile)
    n_steps = _cdiv(B, bt)
    B_pad = n_steps * bt
    # Input side: transpose first (tiny, ~12 B/sample), then pad the lane axis.
    x_lane = x.T
    if B_pad != B:
        x_lane = jnp.pad(x_lane, ((0, 0), (0, B_pad - B)))

    out = _pos_enc_call(x_lane, num_freqs, d_in, include_input, d_out,
                        rows_built=rows_built, bt=bt, transpose_out=True)
    # Kernel already produced the module's (B, d_out) row-major layout; only drop
    # batch padding (a no-op when B is a multiple of the tile).
    return out[:B] if B_pad != B else out


def _reference(x, num_freqs=6, include_input=True):
    B, d_in = x.shape
    freqs = 2.0 ** jnp.linspace(0.0, num_freqs - 1, num_freqs)
    freqs_rep = jnp.repeat(freqs, 2).reshape(1, -1, 1)
    phases = jnp.zeros((2 * num_freqs,), jnp.float32).at[1::2].set(jnp.pi * 0.5)
    phases = phases.reshape(1, -1, 1)
    embed = jnp.repeat(x[:, None, :], 2 * num_freqs, axis=1)
    embed = jnp.sin(phases + embed * freqs_rep).reshape(B, -1)
    if include_input:
        embed = jnp.concatenate([x, embed], axis=-1)
    return embed


if __name__ == "__main__":
    key = jax.random.PRNGKey(0)
    k1, k2 = jax.random.split(key)
    num_freqs, d_in = 6, 3

    # Case 1: batch a multiple of 128 (no padding), include_input=True.
    B1 = 256
    x1 = jax.random.normal(k1, (B1, d_in), dtype=jnp.float32)
    out1 = jax.block_until_ready(
        positional_encoding(x1, num_freqs=num_freqs, include_input=True))
    ref1 = _reference(x1, num_freqs=num_freqs, include_input=True)
    assert out1.shape == (B1, 2 * num_freqs * d_in + d_in)
    assert jnp.allclose(out1, ref1, atol=1e-4, rtol=1e-5), \
        float(jnp.max(jnp.abs(out1 - ref1)))

    # Case 2: ragged batch (exercises padding + slicing), include_input=False.
    B2 = 77
    x2 = jax.random.normal(k2, (B2, d_in), dtype=jnp.float32)
    out2 = jax.block_until_ready(
        positional_encoding(x2, num_freqs=num_freqs, include_input=False))
    ref2 = _reference(x2, num_freqs=num_freqs, include_input=False)
    assert out2.shape == (B2, 2 * num_freqs * d_in)
    assert jnp.allclose(out2, ref2, atol=1e-4, rtol=1e-5), \
        float(jnp.max(jnp.abs(out2 - ref2)))

    # Case 3: lane-major fast path ((d_out, B) output, zero layout shims).
    out3 = jax.block_until_ready(
        positional_encoding_lane_major(x1.T, num_freqs=num_freqs,
                                       include_input=True))
    assert out3.shape == (2 * num_freqs * d_in + d_in, B1)
    assert jnp.allclose(out3, ref1.T, atol=1e-4, rtol=1e-5), \
        float(jnp.max(jnp.abs(out3 - ref1.T)))

    print("KERNEL_OK")
</pallas_src>

<mosaic_0001>
module attributes {stable_mosaic.version = 11 : i64} {
  func.func @_pos_enc_kernel(%arg0: i32, %arg1: memref<3x128xf32, #tpu.memory_space<vmem>>, %arg2: memref<39x128xf32, #tpu.memory_space<vmem>>) attributes {dimension_semantics = [#tpu.dimension_semantics<parallel>], iteration_bounds = array<i64: 2>, scalar_prefetch = 0 : i64, scratch_operands = 0 : i64, tpu.core_type = #tpu.core_type<tc>, window_params = [{transform_indices = @transform_0, window_bounds = array<i64: 3, 128>}, {transform_indices = @transform_1, window_bounds = array<i64: 39, 128>}]} {
    %c0 = arith.constant 0 : index
    %c0_0 = arith.constant 0 : index
    %0 = vector.load %arg1[%c0, %c0_0] : memref<3x128xf32, #tpu.memory_space<vmem>>, vector<3x128xf32>
    %cst = arith.constant 1.000000e+00 : f32
    %1 = vector.broadcast %cst : f32 to vector<3x128xf32>
    %2 = arith.mulf %0, %1 : vector<3x128xf32>
    %cst_1 = arith.constant 1.57079637 : f32
    %3 = vector.broadcast %cst_1 : f32 to vector<3x128xf32>
    %4 = arith.addf %2, %3 : vector<3x128xf32>
    %cst_2 = arith.constant 8.000000e+00 : f32
    %5 = vector.broadcast %cst_2 : f32 to vector<3x128xf32>
    %6 = arith.mulf %0, %5 : vector<3x128xf32>
    %cst_3 = arith.constant 1.57079637 : f32
    %7 = vector.broadcast %cst_3 : f32 to vector<3x128xf32>
    %8 = arith.addf %6, %7 : vector<3x128xf32>
    %9 = tpu.concatenate %2, %4, %6, %8 in 0 : vector<3x128xf32>, vector<3x128xf32>, vector<3x128xf32>, vector<3x128xf32> -> vector<12x128xf32>
    %10 = math.sin %9 : vector<12x128xf32>
    %11 = vector.extract_strided_slice %10 {offsets = [0, 0], sizes = [3, 128], strides = [1, 1]} : vector<12x128xf32> to vector<3x128xf32>
    %12 = vector.extract_strided_slice %10 {offsets = [3, 0], sizes = [3, 128], strides = [1, 1]} : vector<12x128xf32> to vector<3x128xf32>
    %13 = arith.mulf %11, %12 : vector<3x128xf32>
    %cst_4 = arith.constant 2.000000e+00 : f32
    %14 = vector.broadcast %cst_4 : f32 to vector<3x128xf32>
    %15 = arith.mulf %14, %13 : vector<3x128xf32>
    %16 = arith.mulf %11, %11 : vector<3x128xf32>
    %cst_5 = arith.constant 2.000000e+00 : f32
    %17 = vector.broadcast %cst_5 : f32 to vector<3x128xf32>
    %18 = arith.mulf %17, %16 : vector<3x128xf32>
    %cst_6 = arith.constant 1.000000e+00 : f32
    %19 = vector.broadcast %cst_6 : f32 to vector<3x128xf32>
    %20 = arith.subf %19, %18 : vector<3x128xf32>
    %21 = arith.mulf %15, %20 : vector<3x128xf32>
    %cst_7 = arith.constant 2.000000e+00 : f32
    %22 = vector.broadcast %cst_7 : f32 to vector<3x128xf32>
    %23 = arith.mulf %22, %21 : vector<3x128xf32>
    %24 = arith.mulf %15, %15 : vector<3x128xf32>
    %cst_8 = arith.constant 2.000000e+00 : f32
    %25 = vector.broadcast %cst_8 : f32 to vector<3x128xf32>
    %26 = arith.mulf %25, %24 : vector<3x128xf32>
    %cst_9 = arith.constant 1.000000e+00 : f32
    %27 = vector.broadcast %cst_9 : f32 to vector<3x128xf32>
    %28 = arith.subf %27, %26 : vector<3x128xf32>
    %29 = vector.extract_strided_slice %10 {offsets = [6, 0], sizes = [3, 128], strides = [1, 1]} : vector<12x128xf32> to vector<3x128xf32>
    %30 = vector.extract_strided_slice %10 {offsets = [9, 0], sizes = [3, 128], strides = [1, 1]} : vector<12x128xf32> to vector<3x128xf32>
    %31 = arith.mulf %29, %30 : vector<3x128xf32>
    %cst_10 = arith.constant 2.000000e+00 : f32
    %32 = vector.broadcast %cst_10 : f32 to vector<3x128xf32>
    %33 = arith.mulf %32, %31 : vector<3x128xf32>
    %34 = arith.mulf %29, %29 : vector<3x128xf32>
    %cst_11 = arith.constant 2.000000e+00 : f32
    %35 = vector.broadcast %cst_11 : f32 to vector<3x128xf32>
    %36 = arith.mulf %35, %34 : vector<3x128xf32>
    %cst_12 = arith.constant 1.000000e+00 : f32
    %37 = vector.broadcast %cst_12 : f32 to vector<3x128xf32>
    %38 = arith.subf %37, %36 : vector<3x128xf32>
    %39 = arith.mulf %33, %38 : vector<3x128xf32>
    %cst_13 = arith.constant 2.000000e+00 : f32
    %40 = vector.broadcast %cst_13 : f32 to vector<3x128xf32>
    %41 = arith.mulf %40, %39 : vector<3x128xf32>
    %42 = arith.mulf %33, %33 : vector<3x128xf32>
    %cst_14 = arith.constant 2.000000e+00 : f32
    %43 = vector.broadcast %cst_14 : f32 to vector<3x128xf32>
    %44 = arith.mulf %43, %42 : vector<3x128xf32>
    %cst_15 = arith.constant 1.000000e+00 : f32
    %45 = vector.broadcast %cst_15 : f32 to vector<3x128xf32>
    %46 = arith.subf %45, %44 : vector<3x128xf32>
    %47 = tpu.concatenate %0, %11, %12, %15, %20, %23, %28, %29, %30, %33, %38, %41, %46 in 0 : vector<3x128xf32>, vector<3x128xf32>, vector<3x128xf32>, vector<3x128xf32>, vector<3x128xf32>, vector<3x128xf32>, vector<3x128xf32>, vector<3x128xf32>, vector<3x128xf32>, vector<3x128xf32>, vector<3x128xf32>, vector<3x128xf32>, vector<3x128xf32> -> vector<39x128xf32>
    %c0_16 = arith.constant 0 : index
    %c0_17 = arith.constant 0 : index
    %48 = vector.load %arg2[%c0_16, %c0_17] : memref<39x128xf32, #tpu.memory_space<vmem>>, vector<39x128xf32>
    tpu.vector_store %arg2[%c0_16, %c0_17], %47 {strides = array<i32>} : memref<39x128xf32, #tpu.memory_space<vmem>>, vector<39x128xf32>,
    return
  }
  func.func @transform_0(%arg0: i32) -> (i32, i32) {
    %c0_i32 = arith.constant 0 : i32
    %c0_i32_0 = arith.constant 0 : i32
    return %c0_i32, %arg0 : i32, i32
  }
  func.func @transform_1(%arg0: i32) -> (i32, i32) {
    %c0_i32 = arith.constant 0 : i32
    %c0_i32_0 = arith.constant 0 : i32
    return %c0_i32, %arg0 : i32, i32
  }
}

</mosaic_0001>

<llo_original>
// kernel: tpu_custom_call.1
$region0: #{tpu_custom_call.1}
  #allocation0 [shape = 'u32[]', space=smem, size = 0x4, offset = 0x4, fixed_abs, tag = 'smem constant byte address 0x4 - core index']
  #allocation1 [shape = 'u32[144,128]{1,0:T(1,128)}', space=vmem, size = 0x12000, scoped, tag = 'internal scratch']
  %s0 = inlined_call_operand.hbm [shape: f32[3,256], index: 0, kind: input, shape index: {}]
  %s1 = inlined_call_operand.hbm [shape: f32[39,256], index: 1, kind: output, shape index: {}]
  %s2 = sld [smem:[#allocation0]]
  $region41: #{tpu_custom_call.1} parent=0
    _
  %s4 = ssub.s32 1, %s2
  %s5 = scalar_select 0, %s4, %s2
  $region1: #{tpu_custom_call.1} parent=0
    #allocation2 [shape = 'u8[4096]{0}', space=vmem, size = 0x1000, scoped, tag = 'input window, operand 0']
    #allocation3 [shape = 's32[2]{0}', space=sflag, size = 0x8, scoped, tag = 'scoped memory for tpu_custom_call.1']
    #allocation4 [shape = 's32[2]{0}', space=sflag, size = 0x8, scoped, tag = 'scoped memory for tpu_custom_call.1']
    #allocation5 [shape = 'u8[40960]{0}', space=vmem, size = 0xa000, scoped, tag = 'output window, operand 0']
    %6 = vsyncpa [#allocation3], 0
    %s7 = scalar_lea.sflag [#allocation3], 1
    %8 = vsyncpa %s7, 0
    %9 = vsyncpa [#allocation4], 0
    %s10 = scalar_lea.sflag [#allocation4], 1
    %11 = vsyncpa %s10, 0
    loop: start=0, step=1, limit=4
    $region2: #{tpu_custom_call.1} parent=1 // loop_pre_header
      _
    $region3: #{tpu_custom_call.1} parent=1 // loop_header
      %s13 = sphi 0, %s17
      %p14 = scmp.ge.s32.totalorder %s13, 4
      %s23 = sphi 0, %s25
      %s26 = sphi 0, %s23
      %s27 = sphi 0, %s26
      %s43 = sphi 0, %s27
      %s49 = sphi 0, %s51
      %s52 = sphi 0, %s49
      %s53 = sphi 0, %s52
      %s69 = sphi 0, %s53
    $region4: #{tpu_custom_call.1} parent=1 // loop_header_branch
      %16 = sbr.rel (%p14) target = $region8
    $region5: #{tpu_custom_call.1} parent=1 // loop_body
      %s18 = ssub.s32 %s13, 1
      %s19 = ssub.s32 %s13, 2
      %s20 = sadd.s32 %s13, 1
      %s21 = ssub.s32 %s13, %s20
      %p22 = scmp.eq.s32.totalorder %s21, 0
      %s24 = sadd.s32 %s23, 1
      %s25 = scalar_select %p22, %s23, %s24
      %p28 = pneg %p22
      %p29 = scmp.eq.s32.totalorder %s13, 1
      %p30 = por %p28, %p29
      %p31 = scmp.ne.s32.totalorder %s23, %s26
      %p32 = scmp.eq.s32.totalorder %s13, 0
      %p33 = por %p31, %p32
      %p34 = scmp.ne.s32.totalorder %s23, %s26
      %p35 = scmp.eq.s32.totalorder %s18, 1
      %p36 = por %p34, %p35
      %p37 = scmp.ne.s32.totalorder %s26, %s27
      %p38 = scmp.eq.s32.totalorder %s18, 0
      %p39 = por %p37, %p38
      %p40 = scmp.ne.s32.totalorder %s26, %s27
      %p41 = scmp.eq.s32.totalorder %s19, 1
      %p42 = por %p40, %p41
      %p44 = scmp.ne.s32.totalorder %s27, %s43
      %p45 = scmp.eq.s32.totalorder %s19, 0
      %p46 = por %p44, %p45
      %s47 = ssub.s32 %s13, %s20
      %p48 = scmp.eq.s32.totalorder %s47, 0
      %s50 = sadd.s32 %s49, 1
      %s51 = scalar_select %p48, %s49, %s50
      %p54 = pneg %p48
      %p55 = scmp.eq.s32.totalorder %s13, 1
      %p56 = por %p54, %p55
      %p57 = scmp.ne.s32.totalorder %s49, %s52
      %p58 = scmp.eq.s32.totalorder %s13, 0
      %p59 = por %p57, %p58
      %p60 = scmp.ne.s32.totalorder %s49, %s52
      %p61 = scmp.eq.s32.totalorder %s18, 1
      %p62 = por %p60, %p61
      %p63 = scmp.ne.s32.totalorder %s52, %s53
      %p64 = scmp.eq.s32.totalorder %s18, 0
      %p65 = por %p63, %p64
      %p66 = scmp.ne.s32.totalorder %s52, %s53
      %p67 = scmp.eq.s32.totalorder %s19, 1
      %p68 = por %p66, %p67
      %p70 = scmp.ne.s32.totalorder %s53, %s69
      %p71 = scmp.eq.s32.totalorder %s19, 0
      %p72 = por %p70, %p71
      %p73 = scmp.le.s32.totalorder 1, %s13
      %p74 = scmp.lt.s32.totalorder %s13, 3
      %p75 = pnand %p73, %p74
      %p76 = pneg %p75
      // Predicated region
      $region9: #{tpu_custom_call.1} parent=5 // pred_check
        _
      $region10: #{tpu_custom_call.1} parent=5 // pred_check_branch
        %78 = sbr.rel (%p75) target = $region12
      $region11: #{tpu_custom_call.1} parent=5 // pred_region
        %s79 = ssub.s32 %s13, 1
      $region12: #{tpu_custom_call.1} parent=5 // pred_fallthru
        _
      %p80 = scmp.lt.s32.totalorder %s13, 2
      // Predicated region
      $region13: #{tpu_custom_call.1} parent=5 // pred_check
        %p81 = pneg %p80
      $region14: #{tpu_custom_call.1} parent=5 // pred_check_branch
        %83 = sbr.rel (%p81) target = $region16
      $region15: #{tpu_custom_call.1} parent=5 // pred_region
        // Predicated region
        $region17: #{tpu_custom_call.1} parent=15 // pred_check
          %p84 = pneg %p33
        $region18: #{tpu_custom_call.1} parent=15 // pred_check_branch
          %86 = sbr.rel (%p84) target = $region20
        $region19: #{tpu_custom_call.1} parent=15 // pred_region
          %s87 = sand.u32 %s23, 1
          %s88 = scalar_lea.sflag [#allocation3], %s87
          %s89 = sand.u32 %s23, 1
          %s90 = smul.addr %s89, 4
          %s91 = scalar_lea.vmem [#allocation2], %s90
          %s93 = ssub.s32 64, 64
          %94 = vsyncadd %s88, %s93
          %s95 = smul.addr %s13, 64
          %s96 = scalar_lea.hbm %s0, %s95
          %s98 = sshll.u32 %s91, 4
          %s99 = int_to_ptr.vmem [resolvable:$true] %s98
          %101 = dma.hbm_to_vmem [thread:$0]  %s96, 64, %s99, %s88
        $region20: #{tpu_custom_call.1} parent=15 // pred_fallthru
          _
      $region16: #{tpu_custom_call.1} parent=5 // pred_fallthru
        _
      %p102 = scmp.le.s32.totalorder 1, %s13
      %p103 = scmp.lt.s32.totalorder %s13, 3
      %p104 = pnand %p102, %p103
      %p105 = pneg %p104
      // Predicated region
      $region21: #{tpu_custom_call.1} parent=5 // pred_check
        _
      $region22: #{tpu_custom_call.1} parent=5 // pred_check_branch
        %107 = sbr.rel (%p104) target = $region24
      $region23: #{tpu_custom_call.1} parent=5 // pred_region
        %s108 = ssub.s32 %s13, 1
        %s109 = sand.u32 %s26, 1
        %s110 = scalar_lea.sflag [#allocation3], %s109
        %s111 = sand.u32 %s26, 1
        %s112 = smul.addr %s111, 4
        %s113 = scalar_lea.vmem [#allocation2], %s112
        // Predicated region
        $region25: #{tpu_custom_call.1} parent=23 // pred_check
          %p114 = pneg %p39
        $region26: #{tpu_custom_call.1} parent=23 // pred_check_branch
          %116 = sbr.rel (%p114) target = $region28
        $region27: #{tpu_custom_call.1} parent=23 // pred_region
          %117 = dma.done %s110, 64
        $region28: #{tpu_custom_call.1} parent=23 // pred_fallthru
          _
        %s118 = sand.u32 %s26, 1
        %s119 = scalar_lea.sflag [#allocation3], %s118
        %s120 = sand.u32 %s26, 1
        %s121 = smul.addr %s120, 4
        %s122 = scalar_lea.vmem [#allocation2], %s121
        %p123 = pneg %p39
        %p124 = pneg %p36
        %p125 = pneg %p65
        %p126 = pneg %p62
        %s127 = sand.u32 %s52, 1
        %s128 = scalar_lea.sflag [#allocation4], %s127
        %s129 = sand.u32 %s52, 1
        %s130 = smul.addr %s129, 40
        %s131 = scalar_lea.vmem [#allocation5], %s130
        %v132 = vld [vmem:[%s113] sm:$0x7]
        %v133 = vadd.f32 %v132, 1.5707964
        %v134 = vmul.f32 %v132, 8.0
        %v135 = vadd.f32 %v134, 1.5707964
        %v137 = vrot.slane %v133, 5
        %v140 = vrot.slane %v134, 2
        %v143 = vrot.slane %v135, 7
        %vm145 = vcmask 1042432
        %v146 = vsel %vm145, %v132, %v137
        %vm147 = vcmask 1045504
        %v148 = vsel %vm147, %v146, %v140
        %vm149 = vcmask 1040384
        %v150 = vsel %vm149, %v140, %v143
        %v151 = vand.u32 2147483647, %v148
        %vm152 = vcmp.le.f32.partialorder %v151, 0.7853982
        %vm153 = vcmp.lt.s32.totalorder %v148, 0
        %v154 = vand.u32 %v148, 2139095040
        %v155 = vshrl.u32 %v154, 23
        %v156 = vsub.s32 %v155, 127
        %v157 = vand.u32 2147483647, %v148
        %v158 = vand.u32 %v157, 8388607
        %v159 = vor.u32 %v158, 8388608
        %v160 = vsub.s32 0, %v159
        %v161 = vadd.s32 %v156, 1
        %vm162 = vcmp.gt.s32.totalorder %v161, 0
        %v163 = vsel %vm162, %v161, 0
        %v164 = vshrl.u32 %v163, 5
        %v165 = vand.u32 %v163, 31
        %v166 = vsub.s32 32, %v165
        %v167 = vshrl.u32 683565275, %v166
        %v168 = vshll.u32 683565275, %v165
        %v169 = vshrl.u32 2475754826, %v166
        %v170 = vor.u32 %v168, %v169
        %v171 = vshll.u32 2475754826, %v165
        %v172 = vshrl.u32 2131351028, %v166
        %v173 = vor.u32 %v171, %v172
        %v174 = vshll.u32 2131351028, %v165
        %v175 = vshrl.u32 2102212464, %v166
        %v176 = vor.u32 %v174, %v175
        %v177 = vshll.u32 2102212464, %v165
        %v178 = vshrl.u32 920167782, %v166
        %v179 = vor.u32 %v177, %v178
        %v180 = vshll.u32 920167782, %v165
        %v181 = vshrl.u32 1326507024, %v166
        %v182 = vor.u32 %v180, %v181
        %vm183 = vcmp.lt.s32.totalorder %v164, 1
        %vm184 = vcmp.lt.s32.totalorder %v164, 2
        %vm185 = vcmp.lt.s32.totalorder %v164, 3
        %vm186 = vcmp.lt.s32.totalorder %v164, 4
        %v187 = vsel %vm183, %v167, %v170
        %v188 = vsel %vm186, %v176, 2102212464
        %v189 = vsel %vm185, %v173, %v188
        %v190 = vsel %vm184, %v187, %v189
        %v191 = vsel %vm183, %v170, %v173
        %v192 = vsel %vm186, %v179, 920167782
        %v193 = vsel %vm185, %v176, %v192
        %v194 = vsel %vm184, %v191, %v193
        %v195 = vsel %vm183, %v173, %v176
        %v196 = vsel %vm186, %v182, 1326507024
        %v197 = vsel %vm185, %v179, %v196
        %v198 = vsel %vm184, %v195, %v197
        %v199 = vshll.u32 %v159, 8
        %v200 = vmul.u32.u64.compose %v199, %v198
        %v201 = vextract.low.u32 %v200
        %v202 = vextract.high.u32 %v200
        %v203 = vmul.u32.u64.compose %v199, %v194
        %v204 = vextract.low.u32 %v203
        %v205 = vextract.high.u32 %v203
        %v206 = vmul.u32 %v199, %v190
        %v207 = vadd.s32 %v202, %v204
        %vm208 = vc.u32 %v202, %v204
        %v209 = vadd.s32 %v205, 1
        %v210 = vsel %vm208, %v209, %v205
        %v211 = vadd.s32 %v206, %v210
        %v212 = vadd.s32 %v211, 536870912
        %v213 = vshrl.u32 %v212, 30
        %v214 = vshll.u32 %v213, 30
        %v215 = vsub.s32 %v211, %v214
        %vm216 = vcmp.lt.s32.totalorder %v215, 0
        %v217 = vsub.s32 0, %v215
        %v218 = vsel %vm216, %v217, %v215
        %v219 = vclz %v218
        %v220 = vsub.s32 %v219, 2
        %vm221 = vcmp.gt.s32.totalorder 0, %v220
        %v222 = vsel %vm221, 0, %v220
        %v223 = vsub.s32 32, %v222
        %v224 = vshll.u32 %v215, %v222
        %v225 = vshrl.u32 %v207, %v223
        %v226 = vor.u32 %v224, %v225
        %v227 = vsub.s32 4294967266, %v222
        %v228 = vadd.s32 %v227, 127
        %v229 = vshll.u32 %v228, 23
        %v230 = vor.u32 4788187, %v229
        %v231 = vand.u32 2147483647, %v230
        %v233 = vcvt.s32.f32 %v226
        %v234 = vmul.f32 %v233, %v231
        %v235 = vxor.u32 %v234, 2147483648
        %v236 = vsel %vm153, %v235, %v234
        %v237 = vsub.s32 4, %v213
        %v238 = vsel %vm153, %v237, %v213
        %v239 = vsel %vm152, %v148, %v236
        %v240 = vsel %vm152, 0, %v238
        %v241 = vcosq.f32.pop %v239
        %v242 = vsinq.f32.pop %v239
        %vm243 = vweird.f32 %v148
        %v244 = vadd.s32 %v240, 3
        %v245 = vand.u32 %v244, 3
        %vm246 = vcmp.lt.s32.totalorder %v245, 2
        %vm247 = vcmp.eq.s32.totalorder %v245, 0
        %v248 = vxor.u32 %v242, 2147483648
        %v249 = vsel %vm247, %v241, %v248
        %vm250 = vcmp.eq.s32.totalorder %v245, 2
        %v251 = vxor.u32 %v241, 2147483648
        %v252 = vsel %vm250, %v251, %v242
        %v253 = vsel %vm246, %v249, %v252
        %v254 = vsel %vm243, nan, %v253
        %v255 = vand.u32 2147483647, %v150
        %vm256 = vcmp.le.f32.partialorder %v255, 0.7853982
        %vm257 = vcmp.lt.s32.totalorder %v150, 0
        %v258 = vand.u32 %v150, 2139095040
        %v259 = vshrl.u32 %v258, 23
        %v260 = vsub.s32 %v259, 127
        %v261 = vand.u32 2147483647, %v150
        %v262 = vand.u32 %v261, 8388607
        %v263 = vor.u32 %v262, 8388608
        %v264 = vsub.s32 0, %v263
        %v265 = vadd.s32 %v260, 1
        %vm266 = vcmp.gt.s32.totalorder %v265, 0
        %v267 = vsel %vm266, %v265, 0
        %v268 = vshrl.u32 %v267, 5
        %v269 = vand.u32 %v267, 31
        %v270 = vsub.s32 32, %v269
        %v271 = vshrl.u32 683565275, %v270
        %v272 = vshll.u32 683565275, %v269
        %v273 = vshrl.u32 2475754826, %v270
        %v274 = vor.u32 %v272, %v273
        %v275 = vshll.u32 2475754826, %v269
        %v276 = vshrl.u32 2131351028, %v270
        %v277 = vor.u32 %v275, %v276
        %v278 = vshll.u32 2131351028, %v269
        %v279 = vshrl.u32 2102212464, %v270
        %v280 = vor.u32 %v278, %v279
        %v281 = vshll.u32 2102212464, %v269
        %v282 = vshrl.u32 920167782, %v270
        %v283 = vor.u32 %v281, %v282
        %v284 = vshll.u32 920167782, %v269
        %v285 = vshrl.u32 1326507024, %v270
        %v286 = vor.u32 %v284, %v285
        %vm287 = vcmp.lt.s32.totalorder %v268, 1
        %vm288 = vcmp.lt.s32.totalorder %v268, 2
        %vm289 = vcmp.lt.s32.totalorder %v268, 3
        %vm290 = vcmp.lt.s32.totalorder %v268, 4
        %v291 = vsel %vm287, %v271, %v274
        %v292 = vsel %vm290, %v280, 2102212464
        %v293 = vsel %vm289, %v277, %v292
        %v294 = vsel %vm288, %v291, %v293
        %v295 = vsel %vm287, %v274, %v277
        %v296 = vsel %vm290, %v283, 920167782
        %v297 = vsel %vm289, %v280, %v296
        %v298 = vsel %vm288, %v295, %v297
        %v299 = vsel %vm287, %v277, %v280
        %v300 = vsel %vm290, %v286, 1326507024
        %v301 = vsel %vm289, %v283, %v300
        %v302 = vsel %vm288, %v299, %v301
        %v303 = vshll.u32 %v263, 8
        %v304 = vmul.u32.u64.compose %v303, %v302
        %v305 = vextract.low.u32 %v304
        %v306 = vextract.high.u32 %v304
        %v307 = vmul.u32.u64.compose %v303, %v298
        %v308 = vextract.low.u32 %v307
        %v309 = vextract.high.u32 %v307
        %v310 = vmul.u32 %v303, %v294
        %v311 = vadd.s32 %v306, %v308
        %vm312 = vc.u32 %v306, %v308
        %v313 = vadd.s32 %v309, 1
        %v314 = vsel %vm312, %v313, %v309
        %v315 = vadd.s32 %v310, %v314
        %v316 = vadd.s32 %v315, 536870912
        %v317 = vshrl.u32 %v316, 30
        %v318 = vshll.u32 %v317, 30
        %v319 = vsub.s32 %v315, %v318
        %vm320 = vcmp.lt.s32.totalorder %v319, 0
        %v321 = vsub.s32 0, %v319
        %v322 = vsel %vm320, %v321, %v319
        %v323 = vclz %v322
        %v324 = vsub.s32 %v323, 2
        %vm325 = vcmp.gt.s32.totalorder 0, %v324
        %v326 = vsel %vm325, 0, %v324
        %v327 = vsub.s32 32, %v326
        %v328 = vshll.u32 %v319, %v326
        %v329 = vshrl.u32 %v311, %v327
        %v330 = vor.u32 %v328, %v329
        %v331 = vsub.s32 4294967266, %v326
        %v332 = vadd.s32 %v331, 127
        %v333 = vshll.u32 %v332, 23
        %v334 = vor.u32 4788187, %v333
        %v335 = vand.u32 2147483647, %v334
        %v337 = vcvt.s32.f32 %v330
        %v338 = vmul.f32 %v337, %v335
        %v339 = vxor.u32 %v338, 2147483648
        %v340 = vsel %vm257, %v339, %v338
        %v341 = vsub.s32 4, %v317
        %v342 = vsel %vm257, %v341, %v317
        %v343 = vsel %vm256, %v150, %v340
        %v344 = vsel %vm256, 0, %v342
        %v345 = vcosq.f32.pop %v343
        %v346 = vsinq.f32.pop %v343
        %vm347 = vweird.f32 %v150
        %v348 = vadd.s32 %v344, 3
        %v349 = vand.u32 %v348, 3
        %vm350 = vcmp.lt.s32.totalorder %v349, 2
        %vm351 = vcmp.eq.s32.totalorder %v349, 0
        %v352 = vxor.u32 %v346, 2147483648
        %v353 = vsel %vm351, %v345, %v352
        %vm354 = vcmp.eq.s32.totalorder %v349, 2
        %v355 = vxor.u32 %v345, 2147483648
        %v356 = vsel %vm354, %v355, %v346
        %v357 = vsel %vm350, %v353, %v356
        %v358 = vsel %vm347, nan, %v357
        %v360 = vrot.slane %v254, 3
        %v362 = vmul.f32 %v254, %v360
        %v363 = vmul.f32 %v362, 2.0
        %v364 = vmul.f32 %v254, %v254
        %v365 = vmul.f32 %v364, 2.0
        %v366 = vsub.f32 1.0, %v365
        %v367 = vmul.f32 %v363, %v366
        %v368 = vmul.f32 %v367, 2.0
        %v369 = vmul.f32 %v363, %v363
        %v370 = vmul.f32 %v369, 2.0
        %v371 = vsub.f32 1.0, %v370
        %v373 = vrot.slane %v358, 3
        %v375 = vmul.f32 %v254, %v373
        %v376 = vmul.f32 %v358, %v373
        %v377 = vmul.f32 %v375, 2.0
        %v378 = vmul.f32 %v376, 2.0
        %v379 = vmul.f32 %v358, %v358
        %v380 = vmul.f32 %v379, 2.0
        %v381 = vsub.f32 1.0, %v380
        %v382 = vmul.f32 %v377, %v366
        %v383 = vmul.f32 %v378, %v381
        %v384 = vmul.f32 %v382, 2.0
        %v385 = vmul.f32 %v383, 2.0
        %v386 = vmul.f32 %v377, %v377
        %v387 = vmul.f32 %v378, %v378
        %v388 = vmul.f32 %v386, 2.0
        %v389 = vmul.f32 %v387, 2.0
        %v390 = vsub.f32 1.0, %v388
        %v391 = vsub.f32 1.0, %v389
        %v392 = vrot.slane %v254, 5
        %v395 = vrot.slane %v363, 7
        %v398 = vrot.slane %v366, 4
        %v401 = vrot.slane %v368, 1
        %v404 = vrot.slane %v371, 6
        %vm406 = vcmask 1046528
        %v407 = vrot.slane %v254, 1
        %v408 = vrot.slane %v358, 1
        %v409 = vsel %vm406, %v407, %v408
        %vm414 = vcmask 1044480
        %v415 = vrot.slane %v377, 3
        %v416 = vrot.slane %v378, 3
        %v417 = vsel %vm414, %v415, %v416
        %v421 = vrot.slane %v384, 5
        %v422 = vrot.slane %v385, 5
        %v423 = vsel %vm145, %v421, %v422
        %v427 = vrot.slane %v390, 2
        %v428 = vrot.slane %v391, 2
        %v429 = vsel %vm147, %v427, %v428
        %v431 = vsel %vm145, %v132, %v392
        %v432 = vsel %vm147, %v431, %v392
        %v433 = vsel %vm149, %v392, %v395
        %vm434 = vcmask 1043456
        %v435 = vsel %vm434, %v433, %v398
        %v436 = vsel %vm406, %v435, %v401
        %vm437 = vcmask 1041408
        %v438 = vsel %vm437, %v401, %v404
        %v439 = vsel %vm414, %v438, %v409
        %v440 = vsel %vm145, %v408, %v417
        %v441 = vsel %vm147, %v440, %v366
        %v442 = vsel %vm149, %v381, %v423
        %v443 = vsel %vm434, %v442, %v429
        %444 = vst [vmem:[%s131] sm:$0xff] %v432
        %445 = vst [vmem:[%s131 + $0x8] sm:$0xff] %v436
        %446 = vst [vmem:[%s131 + $0x10] sm:$0xff] %v439
        %447 = vst [vmem:[%s131 + $0x18] sm:$0xff] %v441
        %448 = vst [vmem:[%s131 + $0x20] sm:$0x7f] %v443
        %s449 = sand.u32 %s52, 1
        %s450 = scalar_lea.sflag [#allocation4], %s449
        %s451 = sand.u32 %s52, 1
        %s452 = smul.addr %s451, 40
        %s453 = scalar_lea.vmem [#allocation5], %s452
        // Predicated region
        $region29: #{tpu_custom_call.1} parent=23 // pred_check
          %p454 = pneg %p62
        $region30: #{tpu_custom_call.1} parent=23 // pred_check_branch
          %456 = sbr.rel (%p454) target = $region32
        $region31: #{tpu_custom_call.1} parent=23 // pred_region
          %s458 = ssub.s32 640, 640
          %459 = vsyncadd %s450, %s458
          %s460 = smul.addr %s18, 128
          %s461 = scalar_lea.hbm %s1, %s460
          %s462 = sshll.u32 %s453, 4
          %s463 = int_to_ptr.vmem [resolvable:$true] %s462
          %468 = dma.vmem_to_hbm [thread:$0]  %s463, 640, %s461, %s450, 128, 256, 8
        $region32: #{tpu_custom_call.1} parent=23 // pred_fallthru
          _
      $region24: #{tpu_custom_call.1} parent=5 // pred_fallthru
        _
      %p469 = scmp.le.s32.totalorder 2, %s13
      // Predicated region
      $region33: #{tpu_custom_call.1} parent=5 // pred_check
        %p470 = pneg %p469
      $region34: #{tpu_custom_call.1} parent=5 // pred_check_branch
        %472 = sbr.rel (%p470) target = $region36
      $region35: #{tpu_custom_call.1} parent=5 // pred_region
        %s473 = ssub.s32 %s13, 2
        // Predicated region
        $region37: #{tpu_custom_call.1} parent=35 // pred_check
          %p474 = pneg %p68
        $region38: #{tpu_custom_call.1} parent=35 // pred_check_branch
          %476 = sbr.rel (%p474) target = $region40
        $region39: #{tpu_custom_call.1} parent=35 // pred_region
          %s477 = sand.u32 %s53, 1
          %s478 = scalar_lea.sflag [#allocation4], %s477
          %s479 = sand.u32 %s53, 1
          %s480 = smul.addr %s479, 40
          %s481 = scalar_lea.vmem [#allocation5], %s480
          %482 = dma.done %s478, 640
        $region40: #{tpu_custom_call.1} parent=35 // pred_fallthru
          _
      $region36: #{tpu_custom_call.1} parent=5 // pred_fallthru
        _
    $region6: #{tpu_custom_call.1} parent=1 // loop_footer
      %s17 = sadd.s32 1, %s13
    $region7: #{tpu_custom_call.1} parent=1 // loop_footer_branch
      %12 = sbr.rel target = $region3
    $region8: #{tpu_custom_call.1} parent=1 // loop_exit
      _
    %483 = vsyncpa [#allocation3], 1
    %s484 = scalar_lea.sflag [#allocation3], 1
    %485 = vsyncpa %s484, 1
    %486 = vsyncpa [#allocation4], 1
    %s487 = scalar_lea.sflag [#allocation4], 1
    %488 = vsyncpa %s487, 1

</llo_original>
